<compile_context>
chip_gen: v7x
topology: tpu7x:2x2x1
jax: 0.10.0
libtpu: 0.0.40
codegen_flags: <defaults>
</compile_context>

<pallas_src>
import functools

import jax
import jax.numpy as jnp
import numpy as np
from jax.experimental import pallas as pl
from jax.experimental.pallas import tpu as pltpu

_LANE = 128
_SUBLANE = 8
_TB_MAX = 256                      # batch-tile ceiling
_TF_CAP = 32768                    # feature-tile ceiling
_VMEM_BUDGET = 32 * 1024 * 1024    # target footprint of double-buffered blocks
_VMEM_LIMIT = 48 * 1024 * 1024     # scoped VMEM limit (safe on v5e/v6e/v7x)


def _round_up(x, m):
    return ((x + m - 1) // m) * m


def _pca_kernel(a_ref, basis_ref, out_ref):
    # a_ref:     [TB, K+1]  coefficients + ones column (basis dtype)
    # basis_ref: [K+1, TF]  PCA basis with the mean folded in as row K
    # out_ref:   [TB, TF]
    out_ref[...] = jnp.dot(
        a_ref[...], basis_ref[...], preferred_element_type=jnp.float32
    ).astype(out_ref.dtype)


def _pca_forward(a, k_used, basis, *, feature_shape, out_dtype):
    """a: [B, K] float32, k_used: traced int32 scalar, basis: [K+1, F]."""
    B = a.shape[0]
    Kp1, F = basis.shape
    K = Kp1 - 1
    a = a.reshape(B, K)

    # PyTorch `[:, :clip]` as a zero-mask on the tiny coefficient matrix, so
    # kernel shapes (and compilation) are independent of clip.
    col = jnp.arange(K, dtype=jnp.int32)[None, :]
    a = jnp.where(col < k_used, a, 0.0)

    # Ones column picks up the mean row of the basis; pre-cast to the basis
    # dtype here (jit-fused) instead of a per-tile cast inside the kernel.
    a_ext = jnp.concatenate([a, jnp.ones((B, 1), a.dtype)], axis=1)
    a_ext = a_ext.astype(basis.dtype)

    basis_bytes = jnp.dtype(basis.dtype).itemsize
    out_bytes = jnp.dtype(out_dtype).itemsize

    # ---- batch tile: whole batch when it fits (coefficients stay resident),
    # otherwise 256-row tiles with a masked partial edge block. -------------
    if B > _TB_MAX:
        TB = _TB_MAX
        while TB > _SUBLANE and 2 * TB * Kp1 * basis_bytes > _VMEM_BUDGET // 4:
            TB //= 2               # only relevant for very large component counts
    else:
        TB = B                     # block dim == full array dim (allowed)
    nb = pl.cdiv(B, TB)

    # ---- feature tile from the VMEM budget ---------------------------------
    fixed = 2 * TB * Kp1 * basis_bytes                    # coefficient buffers
    per_col = 2 * (Kp1 * basis_bytes + TB * out_bytes)    # per feature column
    F128 = _round_up(F, _LANE)
    tf_budget = max(_LANE, ((_VMEM_BUDGET - fixed) // per_col) // _LANE * _LANE)
    TF = min(tf_budget, _TF_CAP, F128)
    # Keep >= 2 feature tiles when possible so v7x megacore splits on F.
    if F128 > _LANE and pl.cdiv(F128, TF) < 2:
        TF = _round_up(pl.cdiv(F128, 2), _LANE)
    nf = pl.cdiv(F, TF)

    cost = pl.CostEstimate(
        flops=2 * B * Kp1 * F,
        transcendentals=0,
        bytes_accessed=(nf * B * Kp1 * basis_bytes    # coefficients (per F tile)
                        + Kp1 * F * basis_bytes       # basis (read once)
                        + B * F * out_bytes),         # output
    )

    out = pl.pallas_call(
        _pca_kernel,
        out_shape=jax.ShapeDtypeStruct((B, F), out_dtype),
        grid=(nf, nb),   # feature OUTER ("parallel"), batch INNER ("arbitrary")
        in_specs=[
            pl.BlockSpec((TB, Kp1), lambda j, i: (i, 0)),   # coefficients
            pl.BlockSpec((Kp1, TF), lambda j, i: (0, j)),   # basis: resident over i
        ],
        out_specs=pl.BlockSpec((TB, TF), lambda j, i: (i, j)),
        compiler_params=pltpu.CompilerParams(
            dimension_semantics=("parallel", "arbitrary"),
            vmem_limit_bytes=_VMEM_LIMIT),
        cost_estimate=cost,
    )(a_ext, basis)

    return out.reshape((B,) + feature_shape)


class PCA:
    """JAX/Pallas port of the PyTorch PCA module."""

    def __init__(self, mean, diff, basis_dtype=jnp.float32,
                 out_dtype=jnp.float32):
        # basis_dtype=jnp.bfloat16 halves the dominant HBM read of the basis
        # (the mean row is then also bf16; MXU accumulation stays f32).
        # out_dtype=jnp.bfloat16 halves the output write for batch-heavy calls.
        # Defaults keep exact float32 PyTorch semantics.
        mean = np.asarray(mean, dtype=np.float32)
        diff = np.asarray(diff, dtype=np.float32)
        self.feature_shape = tuple(mean.shape)
        self.K = int(diff.shape[0])
        self.F = int(np.prod(self.feature_shape))

        # Mean with the leading [None] axis, like the PyTorch buffer (a=None path).
        self.mean = jnp.asarray(mean)[None]

        # Basis with the mean folded in as the last row: out = [a, 1] @ basis.
        basis = np.concatenate([diff.reshape(self.K, self.F),
                                mean.reshape(1, self.F)], axis=0)
        self._basis = jnp.asarray(basis, dtype=basis_dtype)

        self._fwd = jax.jit(functools.partial(
            _pca_forward, feature_shape=self.feature_shape, out_dtype=out_dtype))

    def __call__(self, a=None, clip=999):
        if a is None:
            return self.mean
        a = jnp.asarray(a, dtype=jnp.float32)
        # PyTorch `[:, :clip]` semantics (incl. clip<=0 / negative clip).
        # TODO(synk): clip must be a static Python int here; a traced clip would
        # need this min/max moved into the jitted function.
        clip = int(clip)
        k_used = min(clip, self.K) if clip >= 0 else max(self.K + clip, 0)
        return self._fwd(a, jnp.int32(k_used), self._basis)


if __name__ == "__main__":
    key = jax.random.PRNGKey(0)
    k_mean, k_diff, k_a = jax.random.split(key, 3)

    B, K = 2, 8                 # batch, number of PCA components
    feat = (16, 16)             # feature (spatial) shape

    mean = jax.random.normal(k_mean, feat, dtype=jnp.float32)
    diff = jax.random.normal(k_diff, (K,) + feat, dtype=jnp.float32)
    a = jax.random.normal(k_a, (B, K), dtype=jnp.float32)

    pca = PCA(mean, diff)

    out = jax.block_until_ready(pca(a))           # default clip=999 (all components)
    ref = mean[None] + jnp.sum(a[:, :, None, None] * diff[None], axis=1)
    np.testing.assert_allclose(np.asarray(out), np.asarray(ref), rtol=1e-4, atol=1e-4)

    # a=None path (returns the stored mean with the leading [None] axis).
    m_only = jax.block_until_ready(pca(None))
    assert m_only.shape == (1,) + feat
    np.testing.assert_allclose(np.asarray(m_only), np.asarray(mean[None]))

    # clip smaller than K (zero-masked coefficients, same compiled kernel).
    out_clip = jax.block_until_ready(pca(a, clip=3))
    ref_clip = mean[None] + jnp.sum(a[:, :3, None, None] * diff[None, :3], axis=1)
    np.testing.assert_allclose(np.asarray(out_clip), np.asarray(ref_clip),
                               rtol=1e-4, atol=1e-4)

    # Non-128-multiple feature size exercises the masked edge feature tile.
    feat2 = (10, 30)
    mean2 = jax.random.normal(k_mean, feat2, dtype=jnp.float32)
    diff2 = jax.random.normal(k_diff, (K,) + feat2, dtype=jnp.float32)
    pca2 = PCA(mean2, diff2)
    out2 = jax.block_until_ready(pca2(a))
    ref2 = mean2[None] + jnp.sum(a[:, :, None, None] * diff2[None], axis=1)
    np.testing.assert_allclose(np.asarray(out2), np.asarray(ref2), rtol=1e-4, atol=1e-4)

    # Multiple batch tiles + masked partial edge batch tile (B > 256, not 8-aligned).
    B_big = 300
    a_big = jax.random.normal(k_a, (B_big, K), dtype=jnp.float32)
    out_big = jax.block_until_ready(pca(a_big))
    ref_big = mean[None] + jnp.einsum('bk,kxy->bxy', a_big, diff)
    np.testing.assert_allclose(np.asarray(out_big), np.asarray(ref_big),
                               rtol=1e-4, atol=1e-4)

    # Optional bf16 basis: compare against a bf16-quantized reference.
    pca_bf16 = PCA(mean, diff, basis_dtype=jnp.bfloat16)
    out_bf16 = jax.block_until_ready(pca_bf16(a))
    a_q = a.astype(jnp.bfloat16).astype(jnp.float32)
    diff_q = diff.astype(jnp.bfloat16).astype(jnp.float32)
    mean_q = mean.astype(jnp.bfloat16).astype(jnp.float32)
    ref_q = mean_q[None] + jnp.sum(a_q[:, :, None, None] * diff_q[None], axis=1)
    np.testing.assert_allclose(np.asarray(out_bf16), np.asarray(ref_q),
                               rtol=1e-4, atol=1e-4)

    print("KERNEL_OK")
</pallas_src>

<mosaic_0001>
module attributes {stable_mosaic.version = 11 : i64} {
  func.func @_pca_kernel(%arg0: i32, %arg1: i32, %arg2: memref<2x9xf32, #tpu.memory_space<vmem>>, %arg3: memref<9x128xf32, #tpu.memory_space<vmem>>, %arg4: memref<2x128xf32, #tpu.memory_space<vmem>>) attributes {dimension_semantics = [#tpu.dimension_semantics<parallel>, #tpu.dimension_semantics<arbitrary>], iteration_bounds = array<i64: 2, 1>, scalar_prefetch = 0 : i64, scratch_operands = 0 : i64, tpu.core_type = #tpu.core_type<tc>, window_params = [{transform_indices = @transform_0, window_bounds = array<i64: 2, 9>}, {transform_indices = @transform_1, window_bounds = array<i64: 9, 128>}, {transform_indices = @transform_2, window_bounds = array<i64: 2, 128>}]} {
    %c0 = arith.constant 0 : index
    %c0_0 = arith.constant 0 : index
    %0 = vector.load %arg2[%c0, %c0_0] : memref<2x9xf32, #tpu.memory_space<vmem>>, vector<2x9xf32>
    %c0_1 = arith.constant 0 : index
    %c0_2 = arith.constant 0 : index
    %1 = vector.load %arg3[%c0_1, %c0_2] : memref<9x128xf32, #tpu.memory_space<vmem>>, vector<9x128xf32>
    %cst = arith.constant dense<0.000000e+00> : vector<2x128xf32>
    %2 = tpu.matmul %0, %1, %cst {dimension_numbers = #tpu.dot_dimension_numbers<[1], [0], [0], [1], [0, 0, 1, 1], [], []>} : vector<2x9xf32>, vector<9x128xf32>, vector<2x128xf32> -> vector<2x128xf32>
    %c0_3 = arith.constant 0 : index
    %c0_4 = arith.constant 0 : index
    %3 = vector.load %arg4[%c0_3, %c0_4] : memref<2x128xf32, #tpu.memory_space<vmem>>, vector<2x128xf32>
    tpu.vector_store %arg4[%c0_3, %c0_4], %2 {strides = array<i32>} : memref<2x128xf32, #tpu.memory_space<vmem>>, vector<2x128xf32>,
    return
  }
  func.func @transform_0(%arg0: i32, %arg1: i32) -> (i32, i32) {
    %c0_i32 = arith.constant 0 : i32
    %c0_i32_0 = arith.constant 0 : i32
    return %arg1, %c0_i32 : i32, i32
  }
  func.func @transform_1(%arg0: i32, %arg1: i32) -> (i32, i32) {
    %c0_i32 = arith.constant 0 : i32
    %c0_i32_0 = arith.constant 0 : i32
    return %c0_i32, %arg0 : i32, i32
  }
  func.func @transform_2(%arg0: i32, %arg1: i32) -> (i32, i32) {
    %c0_i32 = arith.constant 0 : i32
    return %arg1, %arg0 : i32, i32
  }
}

</mosaic_0001>

<llo_original>
// kernel: _pca_forward.1
$region0: #{_pca_forward.1}
  #allocation0 [shape = 'u32[]', space=smem, size = 0x4, offset = 0x4, fixed_abs, tag = 'smem constant byte address 0x4 - core index']
  #allocation1 [shape = 'u32[144,128]{1,0:T(1,128)}', space=vmem, size = 0x12000, scoped, tag = 'internal scratch']
  %s0 = inlined_call_operand.vmem [shape: f32[2,9], index: 0, kind: input, shape index: {}]
  %s1 = inlined_call_operand.hbm [shape: f32[9,256], index: 1, kind: input, shape index: {}]
  %s2 = inlined_call_operand.vmem [shape: f32[2,256], index: 2, kind: output, shape index: {}]
  %s3 = sld [smem:[#allocation0]]
  $region45: #{_pca_forward.1} parent=0
    _
  %s5 = ssub.s32 1, %s3
  %s6 = scalar_select 0, %s5, %s3
  $region1: #{_pca_forward.1} parent=0
    #allocation2 [shape = 'u8[16384]{0}', space=vmem, size = 0x4000, scoped, tag = 'input window, operand 1']
    #allocation3 [shape = 's32[2]{0}', space=sflag, size = 0x8, scoped, tag = 'scoped memory for _pca_forward.1']
    %7 = vsyncpa [#allocation3], 0
    %s8 = scalar_lea.sflag [#allocation3], 1
    %9 = vsyncpa %s8, 0
    loop: start=0, step=1, limit=4
    $region2: #{_pca_forward.1} parent=1 // loop_pre_header
      _
    $region3: #{_pca_forward.1} parent=1 // loop_header
      %s11 = sphi 0, %s15
      %p12 = scmp.ge.s32.totalorder %s11, 4
      %s18 = sphi 0, %s30
      %s19 = sphi 0, %s26
      %s20 = sphi 0, %s18
      %s21 = sphi 0, %s19
      %s22 = sphi 0, %s20
      %s23 = sphi 0, %s21
      %s33 = sphi 0, %s35
      %s36 = sphi 0, %s33
      %s37 = sphi 0, %s36
      %s53 = sphi 0, %s37
      %s59 = sphi 0, %s61
      %s62 = sphi 0, %s59
      %s63 = sphi 0, %s62
      %s79 = sphi 0, %s63
      %s87 = sphi 0, %s89
      %s90 = sphi 0, %s87
      %s91 = sphi 0, %s90
      %s107 = sphi 0, %s91
    $region4: #{_pca_forward.1} parent=1 // loop_header_branch
      %14 = sbr.rel (%p12) target = $region8
    $region5: #{_pca_forward.1} parent=1 // loop_body
      %s16 = ssub.s32 %s11, 1
      %s17 = ssub.s32 %s11, 2
      %s24 = sadd.s32 1, %s19
      %p25 = scmp.ge.s32.totalorder %s24, 1
      %s26 = scalar_select %p25, 0, %s24
      %s27 = sadd.s32 1, %s18
      %s28 = scalar_select %p25, %s27, %s18
      %p29 = scmp.ge.s32.totalorder %s28, 2
      %s30 = scalar_select %p29, 0, %s28
      %s31 = ssub.s32 %s19, %s26
      %p32 = scmp.eq.s32.totalorder %s31, 0
      %s34 = sadd.s32 %s33, 1
      %s35 = scalar_select %p32, %s33, %s34
      %p38 = pneg %p32
      %p39 = scmp.eq.s32.totalorder %s11, 1
      %p40 = por %p38, %p39
      %p41 = scmp.ne.s32.totalorder %s33, %s36
      %p42 = scmp.eq.s32.totalorder %s11, 0
      %p43 = por %p41, %p42
      %p44 = scmp.ne.s32.totalorder %s33, %s36
      %p45 = scmp.eq.s32.totalorder %s16, 1
      %p46 = por %p44, %p45
      %p47 = scmp.ne.s32.totalorder %s36, %s37
      %p48 = scmp.eq.s32.totalorder %s16, 0
      %p49 = por %p47, %p48
      %p50 = scmp.ne.s32.totalorder %s36, %s37
      %p51 = scmp.eq.s32.totalorder %s17, 1
      %p52 = por %p50, %p51
      %p54 = scmp.ne.s32.totalorder %s37, %s53
      %p55 = scmp.eq.s32.totalorder %s17, 0
      %p56 = por %p54, %p55
      %s57 = ssub.s32 %s18, %s30
      %p58 = scmp.eq.s32.totalorder %s57, 0
      %s60 = sadd.s32 %s59, 1
      %s61 = scalar_select %p58, %s59, %s60
      %p64 = pneg %p58
      %p65 = scmp.eq.s32.totalorder %s11, 1
      %p66 = por %p64, %p65
      %p67 = scmp.ne.s32.totalorder %s59, %s62
      %p68 = scmp.eq.s32.totalorder %s11, 0
      %p69 = por %p67, %p68
      %p70 = scmp.ne.s32.totalorder %s59, %s62
      %p71 = scmp.eq.s32.totalorder %s16, 1
      %p72 = por %p70, %p71
      %p73 = scmp.ne.s32.totalorder %s62, %s63
      %p74 = scmp.eq.s32.totalorder %s16, 0
      %p75 = por %p73, %p74
      %p76 = scmp.ne.s32.totalorder %s62, %s63
      %p77 = scmp.eq.s32.totalorder %s17, 1
      %p78 = por %p76, %p77
      %p80 = scmp.ne.s32.totalorder %s63, %s79
      %p81 = scmp.eq.s32.totalorder %s17, 0
      %p82 = por %p80, %p81
      %s83 = ssub.s32 %s19, %s26
      %s84 = ssub.s32 %s18, %s30
      %s85 = sor.u32 %s83, %s84
      %p86 = scmp.eq.s32.totalorder %s85, 0
      %s88 = sadd.s32 %s87, 1
      %s89 = scalar_select %p86, %s87, %s88
      %p92 = pneg %p86
      %p93 = scmp.eq.s32.totalorder %s11, 1
      %p94 = por %p92, %p93
      %p95 = scmp.ne.s32.totalorder %s87, %s90
      %p96 = scmp.eq.s32.totalorder %s11, 0
      %p97 = por %p95, %p96
      %p98 = scmp.ne.s32.totalorder %s87, %s90
      %p99 = scmp.eq.s32.totalorder %s16, 1
      %p100 = por %p98, %p99
      %p101 = scmp.ne.s32.totalorder %s90, %s91
      %p102 = scmp.eq.s32.totalorder %s16, 0
      %p103 = por %p101, %p102
      %p104 = scmp.ne.s32.totalorder %s90, %s91
      %p105 = scmp.eq.s32.totalorder %s17, 1
      %p106 = por %p104, %p105
      %p108 = scmp.ne.s32.totalorder %s91, %s107
      %p109 = scmp.eq.s32.totalorder %s17, 0
      %p110 = por %p108, %p109
      %p111 = scmp.le.s32.totalorder 1, %s11
      %p112 = scmp.lt.s32.totalorder %s11, 3
      %p113 = pnand %p111, %p112
      %p114 = pneg %p113
      // Predicated region
      $region9: #{_pca_forward.1} parent=5 // pred_check
        _
      $region10: #{_pca_forward.1} parent=5 // pred_check_branch
        %116 = sbr.rel (%p113) target = $region12
      $region11: #{_pca_forward.1} parent=5 // pred_region
        %s117 = ssub.s32 %s11, 1
        // Predicated region
        $region13: #{_pca_forward.1} parent=11 // pred_check
          %p118 = pneg %p49
        $region14: #{_pca_forward.1} parent=11 // pred_check_branch
          %120 = sbr.rel (%p118) target = $region16
        $region15: #{_pca_forward.1} parent=11 // pred_region
          %p121 = scmp.lt.s32.totalorder %s21, 0
          %s122 = scalar_select %p121, %s21, 0
          %s123 = smul.addr %s122, 2
          %s124 = scalar_lea.vmem %s0, %s123
        $region16: #{_pca_forward.1} parent=11 // pred_fallthru
          _
      $region12: #{_pca_forward.1} parent=5 // pred_fallthru
        _
      %p125 = scmp.lt.s32.totalorder %s11, 2
      // Predicated region
      $region17: #{_pca_forward.1} parent=5 // pred_check
        %p126 = pneg %p125
      $region18: #{_pca_forward.1} parent=5 // pred_check_branch
        %128 = sbr.rel (%p126) target = $region20
      $region19: #{_pca_forward.1} parent=5 // pred_region
        // Predicated region
        $region21: #{_pca_forward.1} parent=19 // pred_check
          %p129 = pneg %p69
        $region22: #{_pca_forward.1} parent=19 // pred_check_branch
          %131 = sbr.rel (%p129) target = $region24
        $region23: #{_pca_forward.1} parent=19 // pred_region
          %s132 = sand.u32 %s59, 1
          %s133 = scalar_lea.sflag [#allocation3], %s132
          %s134 = sand.u32 %s59, 1
          %s135 = smul.addr %s134, 16
          %s136 = scalar_lea.vmem [#allocation2], %s135
          %s138 = ssub.s32 256, 256
          %139 = vsyncadd %s133, %s138
          %s140 = smul.addr %s18, 128
          %s141 = scalar_lea.hbm %s1, %s140
          %s142 = sshll.u32 %s136, 4
          %s143 = int_to_ptr.vmem [resolvable:$true] %s142
          %148 = dma.hbm_to_vmem [thread:$0]  %s141, 256, %s143, %s133, 256, 128, 8
        $region24: #{_pca_forward.1} parent=19 // pred_fallthru
          _
      $region20: #{_pca_forward.1} parent=5 // pred_fallthru
        _
      %p149 = scmp.le.s32.totalorder 1, %s11
      %p150 = scmp.lt.s32.totalorder %s11, 3
      %p151 = pnand %p149, %p150
      %p152 = pneg %p151
      // Predicated region
      $region25: #{_pca_forward.1} parent=5 // pred_check
        _
      $region26: #{_pca_forward.1} parent=5 // pred_check_branch
        %154 = sbr.rel (%p151) target = $region28
      $region27: #{_pca_forward.1} parent=5 // pred_region
        %s155 = ssub.s32 %s11, 1
        %s156 = sand.u32 %s62, 1
        %s157 = scalar_lea.sflag [#allocation3], %s156
        %s158 = sand.u32 %s62, 1
        %s159 = smul.addr %s158, 16
        %s160 = scalar_lea.vmem [#allocation2], %s159
        // Predicated region
        $region29: #{_pca_forward.1} parent=27 // pred_check
          %p161 = pneg %p75
        $region30: #{_pca_forward.1} parent=27 // pred_check_branch
          %163 = sbr.rel (%p161) target = $region32
        $region31: #{_pca_forward.1} parent=27 // pred_region
          %164 = dma.done %s157, 256
        $region32: #{_pca_forward.1} parent=27 // pred_fallthru
          _
        %p165 = scmp.lt.s32.totalorder %s21, 0
        %s166 = scalar_select %p165, %s21, 0
        %s167 = smul.addr %s166, 2
        %s168 = scalar_lea.vmem %s0, %s167
        %p169 = pneg %p49
        %p170 = pneg %p46
        %s171 = sand.u32 %s62, 1
        %s172 = scalar_lea.sflag [#allocation3], %s171
        %s173 = sand.u32 %s62, 1
        %s174 = smul.addr %s173, 16
        %s175 = scalar_lea.vmem [#allocation2], %s174
        %p176 = pneg %p75
        %p177 = pneg %p72
        %p178 = pneg %p103
        %p179 = pneg %p100
        %p180 = scmp.lt.s32.totalorder %s21, 0
        %s181 = scalar_select %p180, %s21, 0
        %p182 = scmp.lt.s32.totalorder %s20, 1
        %s183 = scalar_select %p182, %s20, 1
        %s184 = smul.addr %s181, 2
        %s185 = sadd.s32 %s183, %s184
        %s186 = smul.addr %s185, 2
        %s187 = scalar_lea.vmem %s2, %s186
        %p188 = scmp.lt.s32.totalorder %s21, 0
        %s189 = scalar_select %p188, %s21, 0
        %s190 = smul.addr %s189, 2
        %s191 = scalar_lea.vmem %s0, %s190
        %p192 = scmp.lt.s32.totalorder %s21, 0
        %s193 = scalar_select %p192, %s21, 0
        %p194 = scmp.lt.s32.totalorder %s20, 1
        %s195 = scalar_select %p194, %s20, 1
        %s196 = smul.addr %s193, 2
        %s197 = sadd.s32 %s195, %s196
        %s198 = smul.addr %s197, 2
        %s199 = scalar_lea.vmem %s2, %s198
        %v200 = vld [vmem:[%s191] sm:$0x3]
        %v201 = vld [vmem:[%s160] sm:$0xff]
        %v202 = vld [vmem:[%s160 + $0x8] sm:$0x1]
        %vm203 = vcmask 72704
        %v205 = vsel %vm203, %v200, 0
        %vm207 = vcmask 1040384
        %v209 = vsel %vm207, %v202, 0
        %211 = vmatprep.subr.mxu0 0.0
        %212 = vmatpush1.msra.mxu0 %v201
        %213 = vmatprep.subr.mxu0 0.0
        %214 = vmatpush1.msra.mxu0 %v209
        %215 = vmatprep.subr.mxu0 0.0
        %216 = vmatpush1.msra.mxu0 0.0
        %217 = vmatprep.subr.mxu0 0.0
        %218 = vmatpush1.msra.mxu0 0.0
        %219 = vmatprep.subr.mxu0 0.0
        %220 = vmatpush1.msra.mxu0 0.0
        %221 = vmatprep.subr.mxu0 0.0
        %222 = vmatpush1.msra.mxu0 0.0
        %223 = vmatprep.subr.mxu0 0.0
        %224 = vmatpush1.msra.mxu0 0.0
        %225 = vmatprep.subr.mxu0 0.0
        %226 = vmatpush1.msra.mxu0 0.0
        %227 = vmatprep.subr.mxu0 0.0
        %228 = vmatpush1.msra.mxu0 0.0
        %229 = vmatprep.subr.mxu0 0.0
        %230 = vmatpush1.msra.mxu0 0.0
        %231 = vmatprep.subr.mxu0 0.0
        %232 = vmatpush1.msra.mxu0 0.0
        %233 = vmatprep.subr.mxu0 0.0
        %234 = vmatpush1.msra.mxu0 0.0
        %235 = vmatprep.subr.mxu0 0.0
        %236 = vmatpush1.msra.mxu0 0.0
        %237 = vmatprep.subr.mxu0 0.0
        %238 = vmatpush1.msra.mxu0 0.0
        %239 = vmatprep.subr.mxu0 0.0
        %240 = vmatpush1.msra.mxu0 0.0
        %241 = vmatprep.subr.mxu0 0.0
        %242 = vmatpush1.msra.mxu0 0.0
        %243 = vmatprep.subr.mxu0 0.0
        %244 = vmatpush1.msra.mxu0 0.0
        %245 = vmatprep.subr.mxu0 0.0
        %246 = vmatpush1.msra.mxu0 0.0
        %247 = vmatprep.subr.mxu0 0.0
        %248 = vmatpush1.msra.mxu0 0.0
        %249 = vmatprep.subr.mxu0 0.0
        %250 = vmatpush1.msra.mxu0 0.0
        %251 = vmatprep.subr.mxu0 0.0
        %252 = vmatpush1.msra.mxu0 0.0
        %253 = vmatprep.subr.mxu0 0.0
        %254 = vmatpush1.msra.mxu0 0.0
        %255 = vmatprep.subr.mxu0 0.0
        %256 = vmatpush1.msra.mxu0 0.0
        %257 = vmatprep.subr.mxu0 0.0
        %258 = vmatpush1.msra.mxu0 0.0
        %259 = vmatprep.subr.mxu0 0.0
        %260 = vmatpush1.msra.mxu0 0.0
        %261 = vmatprep.subr.mxu0 0.0
        %262 = vmatpush1.msra.mxu0 0.0
        %263 = vmatprep.subr.mxu0 0.0
        %264 = vmatpush1.msra.mxu0 0.0
        %265 = vmatprep.subr.mxu0 0.0
        %266 = vmatpush1.msra.mxu0 0.0
        %267 = vmatprep.subr.mxu0 0.0
        %268 = vmatpush1.msra.mxu0 0.0
        %269 = vmatprep.subr.mxu0 0.0
        %270 = vmatpush1.msra.mxu0 0.0
        %271 = vmatprep.subr.mxu0 0.0
        %272 = vmatpush1.msra.mxu0 0.0
        %273 = vmatprep.subr.mxu0 0.0
        %274 = vmatpush1.msra.mxu0 0.0
        %275 = vmatprep.mubr.f32.mxu0 0.0
        %276 = vmatmul.mubr.f32.gmra.mrb[0].mxu0 %v205
        %v277 = vpop.f32.mrb[0].mxu0
        %v278 = vadd.f32 0.0, %v277
        %v279 = vpop.f32.mrb[0].mxu0
        %280 = vdwg.mxu0
        %281 = vst [vmem:[%s199] sm:$0x3] %v278
        %p282 = scmp.lt.s32.totalorder %s21, 0
        %s283 = scalar_select %p282, %s21, 0
        %p284 = scmp.lt.s32.totalorder %s20, 1
        %s285 = scalar_select %p284, %s20, 1
        %s286 = smul.addr %s283, 2
        %s287 = sadd.s32 %s285, %s286
        %s288 = smul.addr %s287, 2
        %s289 = scalar_lea.vmem %s2, %s288
        // Predicated region
        $region33: #{_pca_forward.1} parent=27 // pred_check
          %p290 = pneg %p100
        $region34: #{_pca_forward.1} parent=27 // pred_check_branch
          %292 = sbr.rel (%p290) target = $region36
        $region35: #{_pca_forward.1} parent=27 // pred_region
          _
        $region36: #{_pca_forward.1} parent=27 // pred_fallthru
          _
      $region28: #{_pca_forward.1} parent=5 // pred_fallthru
        _
      %p293 = scmp.le.s32.totalorder 2, %s11
      // Predicated region
      $region37: #{_pca_forward.1} parent=5 // pred_check
        %p294 = pneg %p293
      $region38: #{_pca_forward.1} parent=5 // pred_check_branch
        %296 = sbr.rel (%p294) target = $region40
      $region39: #{_pca_forward.1} parent=5 // pred_region
        %s297 = ssub.s32 %s11, 2
        // Predicated region
        $region41: #{_pca_forward.1} parent=39 // pred_check
          %p298 = pneg %p106
        $region42: #{_pca_forward.1} parent=39 // pred_check_branch
          %300 = sbr.rel (%p298) target = $region44
        $region43: #{_pca_forward.1} parent=39 // pred_region
          %p301 = scmp.lt.s32.totalorder %s23, 0
          %s302 = scalar_select %p301, %s23, 0
          %p303 = scmp.lt.s32.totalorder %s22, 1
          %s304 = scalar_select %p303, %s22, 1
          %s305 = smul.addr %s302, 2
          %s306 = sadd.s32 %s304, %s305
          %s307 = smul.addr %s306, 2
          %s308 = scalar_lea.vmem %s2, %s307
        $region44: #{_pca_forward.1} parent=39 // pred_fallthru
          _
      $region40: #{_pca_forward.1} parent=5 // pred_fallthru
        _
    $region6: #{_pca_forward.1} parent=1 // loop_footer
      %s15 = sadd.s32 1, %s11
    $region7: #{_pca_forward.1} parent=1 // loop_footer_branch
      %10 = sbr.rel target = $region3
    $region8: #{_pca_forward.1} parent=1 // loop_exit
      _
    %309 = vsyncpa [#allocation3], 1
    %s310 = scalar_lea.sflag [#allocation3], 1
    %311 = vsyncpa %s310, 1

</llo_original>
